<compile_context>
chip_gen: v7x
topology: tpu7x:2x2x1
jax: 0.10.0
libtpu: 0.0.40
codegen_flags: <defaults>
</compile_context>

<pallas_src>
import jax
import jax.numpy as jnp
from jax.experimental import pallas as pl
from jax.experimental.pallas import tpu as pltpu


def _make_kernel(use_mxu):
    def attention_head_kernel(x_ref, w_ref, o_ref):
        # x_ref: (TB, S, H) block of hidden_states (native dtype)
        # w_ref: (H, 128) zero-padded projection (MXU path) or (1, H) f32 (VPU path)
        # o_ref: (TB, H)
        tb, s, h = x_ref.shape

        if use_mxu:
            # Logits on the (otherwise idle) MXU.  Only column 0 of the padded
            # RHS is real; the rest are zeros.  S % 8 == 0 makes the reshapes
            # free sublane relabels, so S stays on sublanes throughout.
            logits = jnp.dot(x_ref[...].reshape(tb * s, h), w_ref[...],
                             preferred_element_type=jnp.float32)      # (TB*S, 128)
            attn = logits[:, :1].reshape(tb, s, 1)                    # (TB, S, 1)
        else:
            # VPU multiply + lane reduce with keepdims.  The f32 weight promotes
            # the product/accumulation to f32 without a standalone f32 copy of x.
            attn = jnp.sum(x_ref[...] * w_ref[...][None, :, :],
                           axis=-1, keepdims=True)                    # (TB, S, 1) f32

        # Numerically stable softmax over the sequence (sublane) axis.
        m = jnp.max(attn, axis=1, keepdims=True)                      # (TB, 1, 1)
        e = jnp.exp(attn - m)                                         # (TB, S, 1) f32
        denom = jnp.sum(e, axis=1)                                    # (TB, 1)   f32

        # Deferred normalization: unnormalized weighted sum over S (x consumed
        # in its native dtype, f32 accumulation via promotion), then one scale
        # of the small (TB, H) result by an EUP reciprocal.
        acc = jnp.sum(e * x_ref[...], axis=1)                         # (TB, H) f32
        out = acc * pl.reciprocal(denom, approx=True)                 # (TB, H)
        o_ref[...] = out.astype(o_ref.dtype)

    return attention_head_kernel


def _tpu_generation():
    """Best-effort TPU generation from device_kind; unknown -> most conservative."""
    try:
        kind = jax.devices()[0].device_kind.lower()
    except Exception:
        return 7
    for g in (7, 6, 5, 4):
        if f"v{g}" in kind:
            return g if g >= 5 else 5
    return 7


def _gen_budget(gen):
    """(target block bytes, scoped-VMEM budget) per generation."""
    if gen >= 7:
        # v7x: 64 MiB physical VMEM per TC, 3.2 TB/s HBM -> modest blocks,
        # tight VMEM budget, and >= 2 grid steps to feed both TensorCores.
        return 5 << 20, 48 << 20
    # v4/v5e/v6e: 128 MiB physical VMEM, ~0.8-1.4 TB/s HBM -> big blocks to
    # amortize the ~0.35us/step overhead into the <5% range.
    return 8 << 20, 80 << 20


def _choose_block_b(B, S, H, itemsize, gen):
    """Batch rows per grid step, budgeted against the real in-kernel footprint
    (double-buffered input block + f32 streaming temporaries), not just the
    raw block bytes."""
    target_bytes, vmem_budget = _gen_budget(gen)
    row_bytes = S * H * itemsize
    # Per batch row: 2x input (double buffer) + f32 temp for e*x / MXU logits.
    row_fp = 2 * row_bytes + S * max(H, 128) * 4
    tb = min(target_bytes // max(row_bytes, 1),
             int(0.6 * vmem_budget) // max(row_fp, 1))
    tb = max(int(tb), 1)
    if gen >= 7 and B >= 16:
        tb = min(tb, -(-B // 2))          # keep >= 2 blocks so both v7x TCs work
    tb = min(tb, B)
    if tb < B:
        # Multiple of 8 -> sublane-dense output stores; last block may be ragged
        # (Pallas masks it; no HBM-level padding needed).
        tb = max((tb // 8) * 8, min(8, B))
    return tb


def attention_head(hidden_states, w1t, w2t, *, block_b=None):
    """hidden_states: (B, S, H).  w1t = linear1.weight.T with shape (H, H//2),
    w2t = linear2.weight.T with shape (H//2, 1).  Returns (B, H)."""
    B, S, H = hidden_states.shape
    Hh = w1t.shape[1]
    assert w1t.shape == (H, Hh) and w2t.shape == (Hh, 1)

    # Exact fold of the two bias-free linears (no activation between them).
    w_col = jnp.dot(w1t.astype(jnp.float32), w2t.astype(jnp.float32),
                    preferred_element_type=jnp.float32)               # (H, 1)

    # MXU logits need (TB,S,H)->(TB*S,H) to be a free sublane relabel: S % 8 == 0.
    use_mxu = (S % 8 == 0)
    if use_mxu:
        # Zero-pad the projection to a lane-dense (H, 128) MXU RHS; cast to the
        # input dtype so bf16 inputs hit the bf16 MXU path.
        w_in = jnp.pad(w_col, ((0, 0), (0, 127))).astype(hidden_states.dtype)
        w_spec = pl.BlockSpec((H, 128), lambda b: (0, 0))
    else:
        # Keep f32 so the VPU product/accumulation promotes to f32.
        w_in = w_col.reshape(1, H)
        w_spec = pl.BlockSpec((1, H), lambda b: (0, 0))

    gen = _tpu_generation()
    _, vmem_budget = _gen_budget(gen)
    if block_b is None:
        tb = _choose_block_b(B, S, H, hidden_states.dtype.itemsize, gen)
    else:
        tb = max(1, min(block_b, B))
    n_blocks = pl.cdiv(B, tb)   # ragged last block handled by Pallas (no jnp.pad)

    out = pl.pallas_call(
        _make_kernel(use_mxu),
        out_shape=jax.ShapeDtypeStruct((B, H), hidden_states.dtype),
        grid_spec=pltpu.PrefetchScalarGridSpec(
            num_scalar_prefetch=0,
            grid=(n_blocks,),
            in_specs=[
                pl.BlockSpec((tb, S, H), lambda b: (b, 0, 0)),
                w_spec,
            ],
            out_specs=pl.BlockSpec((tb, H), lambda b: (b, 0)),
        ),
        compiler_params=pltpu.CompilerParams(
            dimension_semantics=("parallel",),
            vmem_limit_bytes=vmem_budget,
        ),
    )(hidden_states, w_in)
    return out


def attention_head_ref(hidden_states, w1t, w2t):
    # Pure-JAX reference mirroring the PyTorch forward (unfolded, f32).
    x = hidden_states.astype(jnp.float32)
    h = jnp.einsum("bsh,hk->bsk", x, w1t.astype(jnp.float32))
    attn = jnp.einsum("bsk,ko->bso", h, w2t.astype(jnp.float32))[..., 0]
    probs = jax.nn.softmax(attn, axis=1)[..., None]          # (B, S, 1)
    return jnp.sum(probs * x, axis=1)                        # (B, H)


if __name__ == "__main__":
    key = jax.random.PRNGKey(0)

    def run_case(B, S, H, dtype, tol, block_b=None):
        k = jax.random.fold_in(key, B * 1000 + S)
        kx, k1, k2 = jax.random.split(k, 3)
        x = jax.random.normal(kx, (B, S, H), jnp.float32).astype(dtype)
        # PyTorch Linear shapes are (out, in); weights passed pre-transposed.
        bound1 = 1.0 / (H ** 0.5)
        bound2 = 1.0 / ((H // 2) ** 0.5)
        w1t = jax.random.uniform(k1, (H, H // 2), jnp.float32, -bound1, bound1)
        w2t = jax.random.uniform(k2, (H // 2, 1), jnp.float32, -bound2, bound2)

        out = jax.block_until_ready(attention_head(x, w1t, w2t, block_b=block_b))
        ref = attention_head_ref(x, w1t, w2t)
        assert out.shape == (B, H)
        err = float(jnp.max(jnp.abs(out.astype(jnp.float32) - ref)))
        assert jnp.allclose(out.astype(jnp.float32), ref, atol=tol, rtol=tol), \
            (B, S, H, str(dtype), err)

    # Small case matching the module's toy shapes (single full-batch block, MXU path).
    run_case(B=2, S=8, H=32, dtype=jnp.float32, tol=5e-3)
    # Larger batch exercising multi-row blocks.
    run_case(B=24, S=8, H=32, dtype=jnp.float32, tol=5e-3)
    # Ragged last block (B % TB != 0) -- no HBM padding, tail rows masked on write.
    run_case(B=20, S=8, H=32, dtype=jnp.float32, tol=5e-3, block_b=8)
    # bf16 input path (bf16 MXU logits, f32 accumulation) -- halves HBM traffic.
    run_case(B=24, S=8, H=32, dtype=jnp.bfloat16, tol=2e-2)
    # S not a multiple of 8 -> VPU multiply + lane-reduce fallback path.
    run_case(B=3, S=5, H=32, dtype=jnp.float32, tol=5e-3)

    print("KERNEL_OK")
</pallas_src>

<mosaic_0001>
module attributes {stable_mosaic.version = 11 : i64} {
  func.func @attention_head_kernel(%arg0: i32, %arg1: memref<2x8x32xf32, #tpu.memory_space<vmem>>, %arg2: memref<32x128xf32, #tpu.memory_space<vmem>>, %arg3: memref<2x32xf32, #tpu.memory_space<vmem>>) attributes {dimension_semantics = [#tpu.dimension_semantics<parallel>], iteration_bounds = array<i64: 1>, scalar_prefetch = 0 : i64, scratch_operands = 0 : i64, tpu.core_type = #tpu.core_type<tc>, window_params = [{transform_indices = @transform_0, window_bounds = array<i64: 2, 8, 32>}, {pipeline_mode = #tpu.pipeline_mode<synchronous>, transform_indices = @transform_1, window_bounds = array<i64: 32, 128>}, {transform_indices = @transform_2, window_bounds = array<i64: 2, 32>}]} {
    %c0 = arith.constant 0 : index
    %c0_0 = arith.constant 0 : index
    %c0_1 = arith.constant 0 : index
    %0 = vector.load %arg1[%c0, %c0_0, %c0_1] : memref<2x8x32xf32, #tpu.memory_space<vmem>>, vector<2x8x32xf32>
    %1 = vector.shape_cast %0 : vector<2x8x32xf32> to vector<16x32xf32>
    %c0_2 = arith.constant 0 : index
    %c0_3 = arith.constant 0 : index
    %2 = vector.load %arg2[%c0_2, %c0_3] : memref<32x128xf32, #tpu.memory_space<vmem>>, vector<32x128xf32>
    %cst = arith.constant dense<0.000000e+00> : vector<16x128xf32>
    %3 = tpu.matmul %1, %2, %cst {dimension_numbers = #tpu.dot_dimension_numbers<[1], [0], [0], [1], [0, 0, 1, 1], [], []>} : vector<16x32xf32>, vector<32x128xf32>, vector<16x128xf32> -> vector<16x128xf32>
    %4 = vector.extract_strided_slice %3 {offsets = [0, 0], sizes = [16, 1], strides = [1, 1]} : vector<16x128xf32> to vector<16x1xf32>
    %5 = vector.shape_cast %4 : vector<16x1xf32> to vector<2x8x1xf32>
    %cst_4 = arith.constant dense<0xFF800000> : vector<2x1xf32>
    %6 = vector.multi_reduction <maximumf>, %5, %cst_4 [1] : vector<2x8x1xf32> to vector<2x1xf32>
    %7 = vector.shape_cast %6 : vector<2x1xf32> to vector<2x1x1xf32>
    %8 = vector.broadcast %7 : vector<2x1x1xf32> to vector<2x8x1xf32>
    %9 = arith.subf %5, %8 : vector<2x8x1xf32>
    %10 = math.exp %9 : vector<2x8x1xf32>
    %cst_5 = arith.constant dense<0.000000e+00> : vector<2x1xf32>
    %11 = vector.multi_reduction <add>, %10, %cst_5 [1] : vector<2x8x1xf32> to vector<2x1xf32>
    %c0_6 = arith.constant 0 : index
    %c0_7 = arith.constant 0 : index
    %c0_8 = arith.constant 0 : index
    %12 = vector.load %arg1[%c0_6, %c0_7, %c0_8] : memref<2x8x32xf32, #tpu.memory_space<vmem>>, vector<2x8x32xf32>
    %13 = vector.broadcast %10 : vector<2x8x1xf32> to vector<2x8x32xf32>
    %14 = arith.mulf %13, %12 : vector<2x8x32xf32>
    %cst_9 = arith.constant dense<0.000000e+00> : vector<2x32xf32>
    %15 = vector.multi_reduction <add>, %14, %cst_9 [1] : vector<2x8x32xf32> to vector<2x32xf32>
    %16 = tpu.reciprocal %11 {approx = true} : vector<2x1xf32> -> vector<2x1xf32>
    %17 = vector.broadcast %16 : vector<2x1xf32> to vector<2x32xf32>
    %18 = arith.mulf %15, %17 : vector<2x32xf32>
    %c0_10 = arith.constant 0 : index
    %c0_11 = arith.constant 0 : index
    %19 = vector.load %arg3[%c0_10, %c0_11] : memref<2x32xf32, #tpu.memory_space<vmem>>, vector<2x32xf32>
    tpu.vector_store %arg3[%c0_10, %c0_11], %18 {strides = array<i32>} : memref<2x32xf32, #tpu.memory_space<vmem>>, vector<2x32xf32>,
    return
  }
  func.func @transform_0(%arg0: i32) -> (i32, i32, i32) {
    %c0_i32 = arith.constant 0 : i32
    %c0_i32_0 = arith.constant 0 : i32
    %c0_i32_1 = arith.constant 0 : i32
    return %arg0, %c0_i32, %c0_i32_0 : i32, i32, i32
  }
  func.func @transform_1(%arg0: i32) -> (i32, i32) {
    %c0_i32 = arith.constant 0 : i32
    %c0_i32_0 = arith.constant 0 : i32
    %c0_i32_1 = arith.constant 0 : i32
    return %c0_i32, %c0_i32_0 : i32, i32
  }
  func.func @transform_2(%arg0: i32) -> (i32, i32) {
    %c0_i32 = arith.constant 0 : i32
    %c0_i32_0 = arith.constant 0 : i32
    return %arg0, %c0_i32 : i32, i32
  }
}

</mosaic_0001>

<llo_original>
// kernel: tpu_custom_call.1
$region0: #{tpu_custom_call.1}
  #allocation0 [shape = 'u32[]', space=smem, size = 0x4, offset = 0x4, fixed_abs, tag = 'smem constant byte address 0x4 - core index']
  #allocation1 [shape = 'u32[144,128]{1,0:T(1,128)}', space=vmem, size = 0x12000, scoped, tag = 'internal scratch']
  %s0 = inlined_call_operand.hbm [shape: f32[2,8,32], index: 0, kind: input, shape index: {}]
  %s1 = inlined_call_operand.hbm [shape: f32[32,128], index: 1, kind: input, shape index: {}]
  %s2 = inlined_call_operand.hbm [shape: f32[2,32], index: 2, kind: output, shape index: {}]
  %s3 = sld [smem:[#allocation0]]
  $region26: #{tpu_custom_call.1} parent=0
    _
  %s5 = ssub.s32 1, %s3
  %s6 = scalar_select 0, %s5, %s3
  $region1: #{tpu_custom_call.1} parent=0
    #allocation2 [shape = 'u8[8192]{0}', space=vmem, size = 0x2000, scoped, tag = 'input window, operand 0, single buffered']
    #allocation3 [shape = 's32[1]{0}', space=sflag, size = 0x4, scoped, tag = 'scoped memory for tpu_custom_call.1']
    #allocation4 [shape = 's32[1]{0}', space=sflag, size = 0x4, scoped, tag = 'scoped memory for tpu_custom_call.1']
    #allocation5 [shape = 'u8[16384]{0}', space=vmem, size = 0x4000, scoped, tag = 'input window, operand 1, single buffered']
    #allocation6 [shape = 's32[1]{0}', space=sflag, size = 0x4, scoped, tag = 'scoped memory for tpu_custom_call.1']
    #allocation7 [shape = 'u8[1024]{0}', space=vmem, size = 0x400, scoped, tag = 'output window, operand 0, single buffered']
    %7 = vsyncpa [#allocation3], 0
    %8 = vsyncpa [#allocation6], 0
    %9 = vsyncpa [#allocation4], 0
    // Predicated region
    $region2: #{tpu_custom_call.1} parent=1 // pred_check
      _
    $region3: #{tpu_custom_call.1} parent=1 // pred_check_branch
      %11 = sbr.rel (0) target = $region5
    $region4: #{tpu_custom_call.1} parent=1 // pred_region
      %s13 = ssub.s32 256, 256
      %14 = vsyncadd [#allocation3], %s13
      %s15 = sshll.u32 [#allocation2], 4
      %s16 = int_to_ptr.vmem [resolvable:$true] %s15
      %21 = dma.hbm_to_vmem [thread:$0]  %s0, 256, %s16, [#allocation3], 128, 128, 8
    $region5: #{tpu_custom_call.1} parent=1 // pred_fallthru
      _
    // Predicated region
    $region6: #{tpu_custom_call.1} parent=1 // pred_check
      _
    $region7: #{tpu_custom_call.1} parent=1 // pred_check_branch
      %23 = sbr.rel (0) target = $region9
    $region8: #{tpu_custom_call.1} parent=1 // pred_region
      %s25 = ssub.s32 512, 512
      %26 = vsyncadd [#allocation6], %s25
      %s27 = sshll.u32 [#allocation5], 4
      %s28 = int_to_ptr.vmem [resolvable:$true] %s27
      %33 = dma.hbm_to_vmem [thread:$0]  %s1, 512, %s28, [#allocation6], 128, 128, 8
    $region9: #{tpu_custom_call.1} parent=1 // pred_fallthru
      _
    // Predicated region
    $region10: #{tpu_custom_call.1} parent=1 // pred_check
      _
    $region11: #{tpu_custom_call.1} parent=1 // pred_check_branch
      %35 = sbr.rel (0) target = $region13
    $region12: #{tpu_custom_call.1} parent=1 // pred_region
      %36 = dma.done [#allocation3], 256
    $region13: #{tpu_custom_call.1} parent=1 // pred_fallthru
      _
    // Predicated region
    $region14: #{tpu_custom_call.1} parent=1 // pred_check
      _
    $region15: #{tpu_custom_call.1} parent=1 // pred_check_branch
      %38 = sbr.rel (0) target = $region17
    $region16: #{tpu_custom_call.1} parent=1 // pred_region
      %39 = dma.done [#allocation6], 512
    $region17: #{tpu_custom_call.1} parent=1 // pred_fallthru
      _
    %v40 = vld [vmem:[#allocation2] sm:$0xff]
    %v41 = vld [vmem:[#allocation2 + $0x8] sm:$0xff]
    %v42 = vld [vmem:[#allocation5] sm:$0xff]
    %v43 = vld [vmem:[#allocation5 + $0x8] sm:$0xff]
    %v44 = vld [vmem:[#allocation5 + $0x10] sm:$0xff]
    %v45 = vld [vmem:[#allocation5 + $0x18] sm:$0xff]
    %vm46 = vcmask 261120
    %v48 = vsel %vm46, %v40, 0
    %v51 = vsel %vm46, %v41, 0
    %53 = vmatprep.subr.mxu0 0.0
    %54 = vmatpush1.msra.mxu0 %v42
    %55 = vmatprep.subr.mxu0 0.0
    %56 = vmatpush1.msra.mxu0 %v43
    %57 = vmatprep.subr.mxu0 0.0
    %58 = vmatpush1.msra.mxu0 %v44
    %59 = vmatprep.subr.mxu0 0.0
    %60 = vmatpush1.msra.mxu0 %v45
    %61 = vmatprep.subr.mxu0 0.0
    %62 = vmatpush1.msra.mxu0 0.0
    %63 = vmatprep.subr.mxu0 0.0
    %64 = vmatpush1.msra.mxu0 0.0
    %65 = vmatprep.subr.mxu0 0.0
    %66 = vmatpush1.msra.mxu0 0.0
    %67 = vmatprep.subr.mxu0 0.0
    %68 = vmatpush1.msra.mxu0 0.0
    %69 = vmatprep.subr.mxu0 0.0
    %70 = vmatpush1.msra.mxu0 0.0
    %71 = vmatprep.subr.mxu0 0.0
    %72 = vmatpush1.msra.mxu0 0.0
    %73 = vmatprep.subr.mxu0 0.0
    %74 = vmatpush1.msra.mxu0 0.0
    %75 = vmatprep.subr.mxu0 0.0
    %76 = vmatpush1.msra.mxu0 0.0
    %77 = vmatprep.subr.mxu0 0.0
    %78 = vmatpush1.msra.mxu0 0.0
    %79 = vmatprep.subr.mxu0 0.0
    %80 = vmatpush1.msra.mxu0 0.0
    %81 = vmatprep.subr.mxu0 0.0
    %82 = vmatpush1.msra.mxu0 0.0
    %83 = vmatprep.subr.mxu0 0.0
    %84 = vmatpush1.msra.mxu0 0.0
    %85 = vmatprep.subr.mxu0 0.0
    %86 = vmatpush1.msra.mxu0 0.0
    %87 = vmatprep.subr.mxu0 0.0
    %88 = vmatpush1.msra.mxu0 0.0
    %89 = vmatprep.subr.mxu0 0.0
    %90 = vmatpush1.msra.mxu0 0.0
    %91 = vmatprep.subr.mxu0 0.0
    %92 = vmatpush1.msra.mxu0 0.0
    %93 = vmatprep.subr.mxu0 0.0
    %94 = vmatpush1.msra.mxu0 0.0
    %95 = vmatprep.subr.mxu0 0.0
    %96 = vmatpush1.msra.mxu0 0.0
    %97 = vmatprep.subr.mxu0 0.0
    %98 = vmatpush1.msra.mxu0 0.0
    %99 = vmatprep.subr.mxu0 0.0
    %100 = vmatpush1.msra.mxu0 0.0
    %101 = vmatprep.subr.mxu0 0.0
    %102 = vmatpush1.msra.mxu0 0.0
    %103 = vmatprep.subr.mxu0 0.0
    %104 = vmatpush1.msra.mxu0 0.0
    %105 = vmatprep.subr.mxu0 0.0
    %106 = vmatpush1.msra.mxu0 0.0
    %107 = vmatprep.subr.mxu0 0.0
    %108 = vmatpush1.msra.mxu0 0.0
    %109 = vmatprep.subr.mxu0 0.0
    %110 = vmatpush1.msra.mxu0 0.0
    %111 = vmatprep.subr.mxu0 0.0
    %112 = vmatpush1.msra.mxu0 0.0
    %113 = vmatprep.subr.mxu0 0.0
    %114 = vmatpush1.msra.mxu0 0.0
    %115 = vmatprep.subr.mxu0 0.0
    %116 = vmatpush1.msra.mxu0 0.0
    %117 = vmatprep.mubr.f32.mxu0 0.0
    %118 = vmatmul.mubr.f32.gmra.mrb[0].mxu0 %v48
    %v119 = vpop.f32.mrb[0].mxu0
    %v120 = vadd.f32 0.0, %v119
    %v121 = vpop.f32.mrb[0].mxu0
    %122 = vmatprep.mubr.f32.mxu0 0.0
    %123 = vmatmul.mubr.f32.gmra.mrb[0].mxu0 %v51
    %v124 = vpop.f32.mrb[0].mxu0
    %v125 = vadd.f32 0.0, %v124
    %v126 = vpop.f32.mrb[0].mxu0
    %127 = vdwg.mxu0
    %vm128 = vcmask 7168
    %v129 = vsel %vm128, %v120, -inf
    %v130 = vrot.slane %v129, 4
    %v131 = vmax.f32 %v129, %v130
    %v132 = vrot.slane %v131, 2
    %v133 = vmax.f32 %v131, %v132
    %v134 = vrot.slane %v133, 1
    %v135 = vmax.f32 %v133, %v134
    %v136 = vsel %vm128, %v125, -inf
    %v137 = vrot.slane %v136, 4
    %v138 = vmax.f32 %v136, %v137
    %v139 = vrot.slane %v138, 2
    %v140 = vmax.f32 %v138, %v139
    %v141 = vrot.slane %v140, 1
    %v142 = vmax.f32 %v140, %v141
    %v143 = vsub.f32 %v120, %v135
    %v144 = vsub.f32 %v125, %v142
    %v145 = vmul.f32 %v143, 1.442695
    %v146 = vpow.pop %v145
    %v147 = vmul.f32 %v144, 1.442695
    %v148 = vpow.pop %v147
    %v149 = vsel %vm128, %v146, 0.0
    %v150 = vrot.slane %v149, 4
    %v151 = vadd.f32 %v149, %v150
    %v152 = vrot.slane %v151, 2
    %v153 = vadd.f32 %v151, %v152
    %v154 = vrot.slane %v153, 1
    %v155 = vadd.f32 %v153, %v154
    %v156 = vsel %vm128, %v148, 0.0
    %v157 = vrot.slane %v156, 4
    %v158 = vadd.f32 %v156, %v157
    %v159 = vrot.slane %v158, 2
    %v160 = vadd.f32 %v158, %v159
    %v161 = vrot.slane %v160, 1
    %v162 = vadd.f32 %v160, %v161
    %164 = vset.pattern.permute.xlu0 0
    %165 = vperm.xlu0 %164, %v146
    %v166 = vpop.permute.xlu0 %165
    %169 = vset.pattern.permute.xlu0 0
    %170 = vperm.xlu0 %169, %v148
    %v171 = vpop.permute.xlu0 %170
    %v173 = vmul.f32 %v166, %v40
    %v174 = vmul.f32 %v171, %v41
    %v175 = vsel %vm46, %v173, 0.0
    %v176 = vrot.slane %v175, 4
    %v177 = vadd.f32 %v175, %v176
    %v178 = vrot.slane %v177, 2
    %v179 = vadd.f32 %v177, %v178
    %v180 = vrot.slane %v179, 1
    %v181 = vadd.f32 %v179, %v180
    %v182 = vsel %vm46, %v174, 0.0
    %v183 = vrot.slane %v182, 4
    %v184 = vadd.f32 %v182, %v183
    %v185 = vrot.slane %v184, 2
    %v186 = vadd.f32 %v184, %v185
    %v187 = vrot.slane %v186, 1
    %v188 = vadd.f32 %v186, %v187
    %v189 = vrcp.pop %v155
    %v190 = vrcp.pop %v162
    %192 = vset.pattern.permute.xlu0 0
    %193 = vperm.xlu0 %192, %v189
    %v194 = vpop.permute.xlu0 %193
    %197 = vset.pattern.permute.xlu0 0
    %198 = vperm.xlu0 %197, %v190
    %v199 = vpop.permute.xlu0 %198
    %v201 = vmul.f32 %v181, %v194
    %v202 = vmul.f32 %v188, %v199
    %vm205 = vcmask 1041409
    %v206 = vsel %vm205, %v202, %v201
    %vm208 = vcmask 254976
    %209 = vst.msk [vmem:[#allocation7] sm:$0x3] %vm208, %v206
    // Predicated region
    $region18: #{tpu_custom_call.1} parent=1 // pred_check
      _
    $region19: #{tpu_custom_call.1} parent=1 // pred_check_branch
      %211 = sbr.rel (0) target = $region21
    $region20: #{tpu_custom_call.1} parent=1 // pred_region
      %s213 = ssub.s32 32, 32
      %214 = vsyncadd [#allocation4], %s213
      %s216 = sshll.u32 [#allocation7], 4
      %s217 = int_to_ptr.vmem [resolvable:$true] %s216
      %219 = dma.vmem_to_hbm [thread:$0]  %s217, 32, %s2, [#allocation4]
    $region21: #{tpu_custom_call.1} parent=1 // pred_fallthru
      _
    // Predicated region
    $region22: #{tpu_custom_call.1} parent=1 // pred_check
      _
    $region23: #{tpu_custom_call.1} parent=1 // pred_check_branch
      %221 = sbr.rel (0) target = $region25
    $region24: #{tpu_custom_call.1} parent=1 // pred_region
      %222 = dma.done [#allocation4], 32
    $region25: #{tpu_custom_call.1} parent=1 // pred_fallthru
      _
    %223 = vsyncpa [#allocation3], 1
    %224 = vsyncpa [#allocation6], 1
    %225 = vsyncpa [#allocation4], 1

</llo_original>
